<compile_context>
chip_gen: v7x
topology: tpu7x:2x2x1
jax: 0.10.0
libtpu: 0.0.40
codegen_flags: <defaults>
</compile_context>

<pallas_src>
import jax
import jax.numpy as jnp
from jax.experimental import pallas as pl
from jax.experimental.pallas import tpu as pltpu

_LANE = 128


def _conv1x1_kernel(w_ref, x_ref, o_ref):
    # w_ref: (C*C,) f32 in SMEM (scalar prefetch).
    # x_ref / o_ref: (tile_b, C, tile_r, 128) VMEM blocks.
    nC = o_ref.shape[1]
    # Load each input channel slab once; reuse across all output channels.
    xs = [x_ref[:, i, :, :].astype(jnp.float32) for i in range(nC)]
    for c in range(nC):
        acc = w_ref[c * nC + 0] * xs[0]
        for i in range(1, nC):
            acc = acc + w_ref[c * nC + i] * xs[i]
        o_ref[:, c, :, :] = acc.astype(o_ref.dtype)


def _conv1x1_matmul(x, weight, *, max_block_bytes=8 * 1024 * 1024):
    """out[b, o, h, w] = sum_i weight[o, i] * x[b, i, h, w] via Pallas."""
    B, C, H, W = x.shape
    HW = H * W
    itemsize = jnp.dtype(x.dtype).itemsize

    # Lane-pad HW to a multiple of 128 and view each channel as a dense
    # (rows, 128) slab.  Pointwise along hw, so padding is numerically inert.
    HW_pad = ((HW + _LANE - 1) // _LANE) * _LANE
    R = HW_pad // _LANE
    x3 = x.reshape(B, C, HW)
    if HW_pad != HW:
        x3 = jnp.pad(x3, ((0, 0), (0, 0), (0, HW_pad - HW)))
    x4 = x3.reshape(B, C, R, _LANE)

    bytes_per_image = C * R * _LANE * itemsize

    if bytes_per_image <= max_block_bytes:
        # Whole image(s) per block: one fully contiguous DMA slab per step.
        tile_b = int(max(1, min(B, max_block_bytes // bytes_per_image)))
        tile_r = R
        grid = (pl.cdiv(B, tile_b),)

        def idx(g, w_sref):  # w_sref: prefetch ref (unused)
            return (g, 0, 0, 0)
    else:
        # Large images: tile the row (sublane) axis in multiples of 8.
        tile_b = 1
        rows_budget = max_block_bytes // (C * _LANE * itemsize)
        tile_r = int(min(R, max(8, (rows_budget // 8) * 8)))
        num_r_tiles = pl.cdiv(R, tile_r)
        grid = (B * num_r_tiles,)

        def idx(g, w_sref):
            return (g // num_r_tiles, 0, g % num_r_tiles, 0)

    # Double-buffered in + out blocks (dense, no padding waste) + headroom.
    block_bytes = tile_b * C * tile_r * _LANE * itemsize
    vmem_limit = 4 * block_bytes + (2 << 20)
    vmem_limit = int(max(16 * 1024 * 1024, min(vmem_limit, 48 * 1024 * 1024)))

    w_flat = weight.astype(jnp.float32).reshape(-1)  # (C*C,) scalars -> SMEM

    block = (tile_b, C, tile_r, _LANE)
    out4 = pl.pallas_call(
        _conv1x1_kernel,
        out_shape=jax.ShapeDtypeStruct((B, C, R, _LANE), x.dtype),
        grid_spec=pltpu.PrefetchScalarGridSpec(
            num_scalar_prefetch=1,           # weight scalars into SMEM
            grid=grid,
            in_specs=[pl.BlockSpec(block, idx)],
            out_specs=pl.BlockSpec(block, idx),
        ),
        compiler_params=pltpu.CompilerParams(
            dimension_semantics=("parallel",),
            vmem_limit_bytes=vmem_limit,
        ),
        cost_estimate=pl.CostEstimate(
            flops=2 * B * C * C * HW_pad,
            transcendentals=0,
            bytes_accessed=2 * B * C * HW_pad * itemsize + C * C * 4,
        ),
    )(w_flat, x4)

    out = out4.reshape(B, C, HW_pad)[:, :, :HW].reshape(B, C, H, W)
    return out


def conv1x1_flow_forward(x, weight, weight_inv, reverse=False):
    """Mirror of Conv1x1Flow.forward.

    Args:
      x: [B, C, H, W] float32 (NCHW, like PyTorch).
      weight: [C, C] flow weight.
      weight_inv: [C, C] inverse weight (used when reverse=True).
    Returns:
      forward: (out [B,C,H,W], logdet scalar = slogdet(weight)[1] * H * W)
      reverse: out [B,C,H,W]
    """
    _, _, H, W = x.shape
    w = weight_inv if reverse else weight
    out = _conv1x1_matmul(x, w)

    if reverse:
        return out
    # Tiny CxC slogdet: plain-JAX glue (not a hot path).
    _, logdet = jnp.linalg.slogdet(weight)
    return out, logdet * (H * W)


def _make_params(in_channels, key):
    # Deterministic orthogonal init (QR of a Gaussian), matching
    # nn.init.orthogonal_ semantics; weight_inv = weight^{-1}.
    a = jax.random.normal(key, (in_channels, in_channels), dtype=jnp.float32)
    q, r = jnp.linalg.qr(a)
    q = q * jnp.sign(jnp.diag(r))[None, :]   # sign-fix for uniqueness
    weight = q.astype(jnp.float32)
    weight_inv = jnp.linalg.inv(weight)
    return weight, weight_inv


if __name__ == "__main__":
    key = jax.random.PRNGKey(0)
    k_w, k_x = jax.random.split(key)

    B, C, H, W = 2, 4, 16, 16
    weight, weight_inv = _make_params(C, k_w)
    x = jax.random.normal(k_x, (B, C, H, W), dtype=jnp.float32)

    # Forward.
    out, logdet = conv1x1_flow_forward(x, weight, weight_inv, reverse=False)
    out = jax.block_until_ready(out)
    logdet = jax.block_until_ready(logdet)

    # Reverse.
    out_rev = conv1x1_flow_forward(out, weight, weight_inv, reverse=True)
    out_rev = jax.block_until_ready(out_rev)

    # Reference check (pure JAX 1x1 conv == einsum over channels).
    ref = jnp.einsum("oi,bihw->bohw", weight, x)
    ref_logdet = jnp.linalg.slogdet(weight)[1] * (H * W)
    assert jnp.allclose(out, ref, atol=1e-5, rtol=1e-5)
    assert jnp.allclose(logdet, ref_logdet, atol=1e-5, rtol=1e-5)
    assert jnp.allclose(out_rev, x, atol=1e-4, rtol=1e-4)

    print("KERNEL_OK")
</pallas_src>

<mosaic_0001>
module attributes {stable_mosaic.version = 11 : i64} {
  func.func @_conv1x1_kernel(%arg0: i32, %arg1: memref<16xf32, #tpu.memory_space<smem>>, %arg2: memref<2x4x2x128xf32, #tpu.memory_space<vmem>>, %arg3: memref<2x4x2x128xf32, #tpu.memory_space<vmem>>) attributes {dimension_semantics = [#tpu.dimension_semantics<parallel>], iteration_bounds = array<i64: 1>, scalar_prefetch = 1 : i64, scratch_operands = 0 : i64, tpu.core_type = #tpu.core_type<tc>, window_params = [{transform_indices = @transform_0, window_bounds = array<i64: 2, 4, 2, 128>}, {transform_indices = @transform_1, window_bounds = array<i64: 2, 4, 2, 128>}]} {
    %c0 = arith.constant 0 : index
    %c0_0 = arith.constant 0 : index
    %c0_1 = arith.constant 0 : index
    %c0_2 = arith.constant 0 : index
    %0 = vector.load %arg2[%c0, %c0_0, %c0_1, %c0_2] : memref<2x4x2x128xf32, #tpu.memory_space<vmem>>, vector<2x1x2x128xf32>
    %1 = vector.shape_cast %0 : vector<2x1x2x128xf32> to vector<2x2x128xf32>
    %c0_3 = arith.constant 0 : index
    %c1 = arith.constant 1 : index
    %c0_4 = arith.constant 0 : index
    %c0_5 = arith.constant 0 : index
    %2 = vector.load %arg2[%c0_3, %c1, %c0_4, %c0_5] : memref<2x4x2x128xf32, #tpu.memory_space<vmem>>, vector<2x1x2x128xf32>
    %3 = vector.shape_cast %2 : vector<2x1x2x128xf32> to vector<2x2x128xf32>
    %c0_6 = arith.constant 0 : index
    %c2 = arith.constant 2 : index
    %c0_7 = arith.constant 0 : index
    %c0_8 = arith.constant 0 : index
    %4 = vector.load %arg2[%c0_6, %c2, %c0_7, %c0_8] : memref<2x4x2x128xf32, #tpu.memory_space<vmem>>, vector<2x1x2x128xf32>
    %5 = vector.shape_cast %4 : vector<2x1x2x128xf32> to vector<2x2x128xf32>
    %c0_9 = arith.constant 0 : index
    %c3 = arith.constant 3 : index
    %c0_10 = arith.constant 0 : index
    %c0_11 = arith.constant 0 : index
    %6 = vector.load %arg2[%c0_9, %c3, %c0_10, %c0_11] : memref<2x4x2x128xf32, #tpu.memory_space<vmem>>, vector<2x1x2x128xf32>
    %7 = vector.shape_cast %6 : vector<2x1x2x128xf32> to vector<2x2x128xf32>
    %c0_12 = arith.constant 0 : index
    %8 = memref.load %arg1[%c0_12] : memref<16xf32, #tpu.memory_space<smem>>
    %9 = vector.broadcast %8 : f32 to vector<2x2x128xf32>
    %10 = arith.mulf %9, %1 : vector<2x2x128xf32>
    %c1_13 = arith.constant 1 : index
    %11 = memref.load %arg1[%c1_13] : memref<16xf32, #tpu.memory_space<smem>>
    %12 = vector.broadcast %11 : f32 to vector<2x2x128xf32>
    %13 = arith.mulf %12, %3 : vector<2x2x128xf32>
    %14 = arith.addf %10, %13 : vector<2x2x128xf32>
    %c2_14 = arith.constant 2 : index
    %15 = memref.load %arg1[%c2_14] : memref<16xf32, #tpu.memory_space<smem>>
    %16 = vector.broadcast %15 : f32 to vector<2x2x128xf32>
    %17 = arith.mulf %16, %5 : vector<2x2x128xf32>
    %18 = arith.addf %14, %17 : vector<2x2x128xf32>
    %c3_15 = arith.constant 3 : index
    %19 = memref.load %arg1[%c3_15] : memref<16xf32, #tpu.memory_space<smem>>
    %20 = vector.broadcast %19 : f32 to vector<2x2x128xf32>
    %21 = arith.mulf %20, %7 : vector<2x2x128xf32>
    %22 = arith.addf %18, %21 : vector<2x2x128xf32>
    %c0_16 = arith.constant 0 : index
    %c0_17 = arith.constant 0 : index
    %c0_18 = arith.constant 0 : index
    %c0_19 = arith.constant 0 : index
    %23 = vector.load %arg3[%c0_16, %c0_17, %c0_18, %c0_19] : memref<2x4x2x128xf32, #tpu.memory_space<vmem>>, vector<2x1x2x128xf32>
    %24 = vector.shape_cast %23 : vector<2x1x2x128xf32> to vector<2x2x128xf32>
    %25 = vector.shape_cast %22 : vector<2x2x128xf32> to vector<2x1x2x128xf32>
    tpu.vector_store %arg3[%c0_16, %c0_17, %c0_18, %c0_19], %25 {strides = array<i32>} : memref<2x4x2x128xf32, #tpu.memory_space<vmem>>, vector<2x1x2x128xf32>,
    %c4 = arith.constant 4 : index
    %26 = memref.load %arg1[%c4] : memref<16xf32, #tpu.memory_space<smem>>
    %27 = vector.broadcast %26 : f32 to vector<2x2x128xf32>
    %28 = arith.mulf %27, %1 : vector<2x2x128xf32>
    %c5 = arith.constant 5 : index
    %29 = memref.load %arg1[%c5] : memref<16xf32, #tpu.memory_space<smem>>
    %30 = vector.broadcast %29 : f32 to vector<2x2x128xf32>
    %31 = arith.mulf %30, %3 : vector<2x2x128xf32>
    %32 = arith.addf %28, %31 : vector<2x2x128xf32>
    %c6 = arith.constant 6 : index
    %33 = memref.load %arg1[%c6] : memref<16xf32, #tpu.memory_space<smem>>
    %34 = vector.broadcast %33 : f32 to vector<2x2x128xf32>
    %35 = arith.mulf %34, %5 : vector<2x2x128xf32>
    %36 = arith.addf %32, %35 : vector<2x2x128xf32>
    %c7 = arith.constant 7 : index
    %37 = memref.load %arg1[%c7] : memref<16xf32, #tpu.memory_space<smem>>
    %38 = vector.broadcast %37 : f32 to vector<2x2x128xf32>
    %39 = arith.mulf %38, %7 : vector<2x2x128xf32>
    %40 = arith.addf %36, %39 : vector<2x2x128xf32>
    %c0_20 = arith.constant 0 : index
    %c1_21 = arith.constant 1 : index
    %c0_22 = arith.constant 0 : index
    %c0_23 = arith.constant 0 : index
    %41 = vector.load %arg3[%c0_20, %c1_21, %c0_22, %c0_23] : memref<2x4x2x128xf32, #tpu.memory_space<vmem>>, vector<2x1x2x128xf32>
    %42 = vector.shape_cast %41 : vector<2x1x2x128xf32> to vector<2x2x128xf32>
    %43 = vector.shape_cast %40 : vector<2x2x128xf32> to vector<2x1x2x128xf32>
    tpu.vector_store %arg3[%c0_20, %c1_21, %c0_22, %c0_23], %43 {strides = array<i32>} : memref<2x4x2x128xf32, #tpu.memory_space<vmem>>, vector<2x1x2x128xf32>,
    %c8 = arith.constant 8 : index
    %44 = memref.load %arg1[%c8] : memref<16xf32, #tpu.memory_space<smem>>
    %45 = vector.broadcast %44 : f32 to vector<2x2x128xf32>
    %46 = arith.mulf %45, %1 : vector<2x2x128xf32>
    %c9 = arith.constant 9 : index
    %47 = memref.load %arg1[%c9] : memref<16xf32, #tpu.memory_space<smem>>
    %48 = vector.broadcast %47 : f32 to vector<2x2x128xf32>
    %49 = arith.mulf %48, %3 : vector<2x2x128xf32>
    %50 = arith.addf %46, %49 : vector<2x2x128xf32>
    %c10 = arith.constant 10 : index
    %51 = memref.load %arg1[%c10] : memref<16xf32, #tpu.memory_space<smem>>
    %52 = vector.broadcast %51 : f32 to vector<2x2x128xf32>
    %53 = arith.mulf %52, %5 : vector<2x2x128xf32>
    %54 = arith.addf %50, %53 : vector<2x2x128xf32>
    %c11 = arith.constant 11 : index
    %55 = memref.load %arg1[%c11] : memref<16xf32, #tpu.memory_space<smem>>
    %56 = vector.broadcast %55 : f32 to vector<2x2x128xf32>
    %57 = arith.mulf %56, %7 : vector<2x2x128xf32>
    %58 = arith.addf %54, %57 : vector<2x2x128xf32>
    %c0_24 = arith.constant 0 : index
    %c2_25 = arith.constant 2 : index
    %c0_26 = arith.constant 0 : index
    %c0_27 = arith.constant 0 : index
    %59 = vector.load %arg3[%c0_24, %c2_25, %c0_26, %c0_27] : memref<2x4x2x128xf32, #tpu.memory_space<vmem>>, vector<2x1x2x128xf32>
    %60 = vector.shape_cast %59 : vector<2x1x2x128xf32> to vector<2x2x128xf32>
    %61 = vector.shape_cast %58 : vector<2x2x128xf32> to vector<2x1x2x128xf32>
    tpu.vector_store %arg3[%c0_24, %c2_25, %c0_26, %c0_27], %61 {strides = array<i32>} : memref<2x4x2x128xf32, #tpu.memory_space<vmem>>, vector<2x1x2x128xf32>,
    %c12 = arith.constant 12 : index
    %62 = memref.load %arg1[%c12] : memref<16xf32, #tpu.memory_space<smem>>
    %63 = vector.broadcast %62 : f32 to vector<2x2x128xf32>
    %64 = arith.mulf %63, %1 : vector<2x2x128xf32>
    %c13 = arith.constant 13 : index
    %65 = memref.load %arg1[%c13] : memref<16xf32, #tpu.memory_space<smem>>
    %66 = vector.broadcast %65 : f32 to vector<2x2x128xf32>
    %67 = arith.mulf %66, %3 : vector<2x2x128xf32>
    %68 = arith.addf %64, %67 : vector<2x2x128xf32>
    %c14 = arith.constant 14 : index
    %69 = memref.load %arg1[%c14] : memref<16xf32, #tpu.memory_space<smem>>
    %70 = vector.broadcast %69 : f32 to vector<2x2x128xf32>
    %71 = arith.mulf %70, %5 : vector<2x2x128xf32>
    %72 = arith.addf %68, %71 : vector<2x2x128xf32>
    %c15 = arith.constant 15 : index
    %73 = memref.load %arg1[%c15] : memref<16xf32, #tpu.memory_space<smem>>
    %74 = vector.broadcast %73 : f32 to vector<2x2x128xf32>
    %75 = arith.mulf %74, %7 : vector<2x2x128xf32>
    %76 = arith.addf %72, %75 : vector<2x2x128xf32>
    %c0_28 = arith.constant 0 : index
    %c3_29 = arith.constant 3 : index
    %c0_30 = arith.constant 0 : index
    %c0_31 = arith.constant 0 : index
    %77 = vector.load %arg3[%c0_28, %c3_29, %c0_30, %c0_31] : memref<2x4x2x128xf32, #tpu.memory_space<vmem>>, vector<2x1x2x128xf32>
    %78 = vector.shape_cast %77 : vector<2x1x2x128xf32> to vector<2x2x128xf32>
    %79 = vector.shape_cast %76 : vector<2x2x128xf32> to vector<2x1x2x128xf32>
    tpu.vector_store %arg3[%c0_28, %c3_29, %c0_30, %c0_31], %79 {strides = array<i32>} : memref<2x4x2x128xf32, #tpu.memory_space<vmem>>, vector<2x1x2x128xf32>,
    return
  }
  func.func @transform_0(%arg0: i32, %arg1: memref<16xf32, #tpu.memory_space<smem>>) -> (i32, i32, i32, i32) {
    %c0_i32 = arith.constant 0 : i32
    %c0_i32_0 = arith.constant 0 : i32
    %c0_i32_1 = arith.constant 0 : i32
    %c0_i32_2 = arith.constant 0 : i32
    return %arg0, %c0_i32, %c0_i32_0, %c0_i32_1 : i32, i32, i32, i32
  }
  func.func @transform_1(%arg0: i32, %arg1: memref<16xf32, #tpu.memory_space<smem>>) -> (i32, i32, i32, i32) {
    %c0_i32 = arith.constant 0 : i32
    %c0_i32_0 = arith.constant 0 : i32
    %c0_i32_1 = arith.constant 0 : i32
    %c0_i32_2 = arith.constant 0 : i32
    return %arg0, %c0_i32, %c0_i32_0, %c0_i32_1 : i32, i32, i32, i32
  }
}

</mosaic_0001>

<llo_original>
// kernel: tpu_custom_call.1
$region0: #{tpu_custom_call.1}
  #allocation0 [shape = 'u32[]', space=smem, size = 0x4, offset = 0x4, fixed_abs, tag = 'smem constant byte address 0x4 - core index']
  #allocation1 [shape = 'u32[144,128]{1,0:T(1,128)}', space=vmem, size = 0x12000, scoped, tag = 'internal scratch']
  #allocation2 [shape = 's32[1]{0}', space=sflag, size = 0x4, scoped, tag = 'scoped memory for tpu_custom_call.1']
  #allocation3 [shape = 'u8[512]{0}', space=smem, size = 0x200, scoped, tag = 'prefetched SMEM operand 0']
  %s0 = inlined_call_operand.hbm [shape: f32[16], index: 0, kind: input, shape index: {}]
  %s1 = inlined_call_operand.hbm [shape: f32[2,4,2,128], index: 1, kind: input, shape index: {}]
  %s2 = inlined_call_operand.hbm [shape: f32[2,4,2,128], index: 2, kind: output, shape index: {}]
  %s3 = sld [smem:[#allocation0]]
  $region18: #{tpu_custom_call.1} parent=0
    _
  %s5 = ssub.s32 1, %s3
  %s6 = scalar_select 0, %s5, %s3
  %8 = dma.hbm_to_smem %s0, 16, [#allocation3], [#allocation2]
  %9 = dma.done [#allocation2], 16
  %10 = sfence
  $region1: #{tpu_custom_call.1} parent=0
    #allocation4 [shape = 'u8[8192]{0}', space=vmem, size = 0x2000, scoped, tag = 'input window, operand 1, single buffered']
    #allocation5 [shape = 's32[1]{0}', space=sflag, size = 0x4, scoped, tag = 'scoped memory for tpu_custom_call.1']
    #allocation6 [shape = 's32[1]{0}', space=sflag, size = 0x4, scoped, tag = 'scoped memory for tpu_custom_call.1']
    #allocation7 [shape = 'u8[8192]{0}', space=vmem, size = 0x2000, scoped, tag = 'output window, operand 0, single buffered']
    %11 = vsyncpa [#allocation5], 0
    %12 = vsyncpa [#allocation6], 0
    // Predicated region
    $region2: #{tpu_custom_call.1} parent=1 // pred_check
      _
    $region3: #{tpu_custom_call.1} parent=1 // pred_check_branch
      %14 = sbr.rel (0) target = $region5
    $region4: #{tpu_custom_call.1} parent=1 // pred_region
      %s16 = ssub.s32 256, 256
      %17 = vsyncadd [#allocation5], %s16
      %s18 = sshll.u32 [#allocation4], 4
      %s19 = int_to_ptr.vmem [resolvable:$true] %s18
      %24 = dma.hbm_to_vmem [thread:$0]  %s1, 256, %s19, [#allocation5], 32, 32, 2
    $region5: #{tpu_custom_call.1} parent=1 // pred_fallthru
      _
    // Predicated region
    $region6: #{tpu_custom_call.1} parent=1 // pred_check
      _
    $region7: #{tpu_custom_call.1} parent=1 // pred_check_branch
      %26 = sbr.rel (0) target = $region9
    $region8: #{tpu_custom_call.1} parent=1 // pred_region
      %27 = dma.done [#allocation5], 256
    $region9: #{tpu_custom_call.1} parent=1 // pred_fallthru
      _
    %v28 = vld [vmem:[#allocation4] sm:$0x3]
    %v29 = vld [vmem:[#allocation4 + $0x8] sm:$0x3]
    %s30 = scalar_lea.vmem [#allocation4], 2
    %v31 = vld [vmem:[%s30] sm:$0x3]
    %v32 = vld [vmem:[%s30 + $0x8] sm:$0x3]
    %s33 = scalar_lea.vmem [#allocation4], 4
    %v34 = vld [vmem:[%s33] sm:$0x3]
    %v35 = vld [vmem:[%s33 + $0x8] sm:$0x3]
    %s36 = scalar_lea.vmem [#allocation4], 6
    %v37 = vld [vmem:[%s36] sm:$0x3]
    %v38 = vld [vmem:[%s36 + $0x8] sm:$0x3]
    %s39 = sld [smem:[#allocation3]]
    %v40 = vstv %s39
    %v41 = vmul.f32 %v40, %v28
    %v42 = vmul.f32 %v40, %v29
    %s43 = sld [smem:[#allocation3 + $0x1]]
    %v44 = vstv %s43
    %v45 = vmul.f32 %v44, %v31
    %v46 = vmul.f32 %v44, %v32
    %v47 = vadd.f32 %v41, %v45
    %v48 = vadd.f32 %v42, %v46
    %s49 = sld [smem:[#allocation3 + $0x2]]
    %v50 = vstv %s49
    %v51 = vmul.f32 %v50, %v34
    %v52 = vmul.f32 %v50, %v35
    %v53 = vadd.f32 %v47, %v51
    %v54 = vadd.f32 %v48, %v52
    %s55 = sld [smem:[#allocation3 + $0x3]]
    %v56 = vstv %s55
    %v57 = vmul.f32 %v56, %v37
    %v58 = vmul.f32 %v56, %v38
    %v59 = vadd.f32 %v53, %v57
    %v60 = vadd.f32 %v54, %v58
    %61 = vst [vmem:[#allocation7] sm:$0x3] %v59
    %62 = vst [vmem:[#allocation7 + $0x8] sm:$0x3] %v60
    %s63 = sld [smem:[#allocation3 + $0x4]]
    %v64 = vstv %s63
    %v65 = vmul.f32 %v64, %v28
    %v66 = vmul.f32 %v64, %v29
    %s67 = sld [smem:[#allocation3 + $0x5]]
    %v68 = vstv %s67
    %v69 = vmul.f32 %v68, %v31
    %v70 = vmul.f32 %v68, %v32
    %v71 = vadd.f32 %v65, %v69
    %v72 = vadd.f32 %v66, %v70
    %s73 = sld [smem:[#allocation3 + $0x6]]
    %v74 = vstv %s73
    %v75 = vmul.f32 %v74, %v34
    %v76 = vmul.f32 %v74, %v35
    %v77 = vadd.f32 %v71, %v75
    %v78 = vadd.f32 %v72, %v76
    %s79 = sld [smem:[#allocation3 + $0x7]]
    %v80 = vstv %s79
    %v81 = vmul.f32 %v80, %v37
    %v82 = vmul.f32 %v80, %v38
    %v83 = vadd.f32 %v77, %v81
    %v84 = vadd.f32 %v78, %v82
    %s85 = scalar_lea.vmem [#allocation7], 2
    %86 = vst [vmem:[%s85] sm:$0x3] %v83
    %87 = vst [vmem:[%s85 + $0x8] sm:$0x3] %v84
    %s88 = sld [smem:[#allocation3 + $0x8]]
    %v89 = vstv %s88
    %v90 = vmul.f32 %v89, %v28
    %v91 = vmul.f32 %v89, %v29
    %s92 = sld [smem:[#allocation3 + $0x9]]
    %v93 = vstv %s92
    %v94 = vmul.f32 %v93, %v31
    %v95 = vmul.f32 %v93, %v32
    %v96 = vadd.f32 %v90, %v94
    %v97 = vadd.f32 %v91, %v95
    %s98 = sld [smem:[#allocation3 + $0xa]]
    %v99 = vstv %s98
    %v100 = vmul.f32 %v99, %v34
    %v101 = vmul.f32 %v99, %v35
    %v102 = vadd.f32 %v96, %v100
    %v103 = vadd.f32 %v97, %v101
    %s104 = sld [smem:[#allocation3 + $0xb]]
    %v105 = vstv %s104
    %v106 = vmul.f32 %v105, %v37
    %v107 = vmul.f32 %v105, %v38
    %v108 = vadd.f32 %v102, %v106
    %v109 = vadd.f32 %v103, %v107
    %s110 = scalar_lea.vmem [#allocation7], 4
    %111 = vst [vmem:[%s110] sm:$0x3] %v108
    %112 = vst [vmem:[%s110 + $0x8] sm:$0x3] %v109
    %s113 = sld [smem:[#allocation3 + $0xc]]
    %v114 = vstv %s113
    %v115 = vmul.f32 %v114, %v28
    %v116 = vmul.f32 %v114, %v29
    %s117 = sld [smem:[#allocation3 + $0xd]]
    %v118 = vstv %s117
    %v119 = vmul.f32 %v118, %v31
    %v120 = vmul.f32 %v118, %v32
    %v121 = vadd.f32 %v115, %v119
    %v122 = vadd.f32 %v116, %v120
    %s123 = sld [smem:[#allocation3 + $0xe]]
    %v124 = vstv %s123
    %v125 = vmul.f32 %v124, %v34
    %v126 = vmul.f32 %v124, %v35
    %v127 = vadd.f32 %v121, %v125
    %v128 = vadd.f32 %v122, %v126
    %s129 = sld [smem:[#allocation3 + $0xf]]
    %v130 = vstv %s129
    %v131 = vmul.f32 %v130, %v37
    %v132 = vmul.f32 %v130, %v38
    %v133 = vadd.f32 %v127, %v131
    %v134 = vadd.f32 %v128, %v132
    %s135 = scalar_lea.vmem [#allocation7], 6
    %136 = vst [vmem:[%s135] sm:$0x3] %v133
    %137 = vst [vmem:[%s135 + $0x8] sm:$0x3] %v134
    // Predicated region
    $region10: #{tpu_custom_call.1} parent=1 // pred_check
      _
    $region11: #{tpu_custom_call.1} parent=1 // pred_check_branch
      %139 = sbr.rel (0) target = $region13
    $region12: #{tpu_custom_call.1} parent=1 // pred_region
      %s141 = ssub.s32 256, 256
      %142 = vsyncadd [#allocation6], %s141
      %s143 = sshll.u32 [#allocation7], 4
      %s144 = int_to_ptr.vmem [resolvable:$true] %s143
      %149 = dma.vmem_to_hbm [thread:$0]  %s144, 256, %s2, [#allocation6], 32, 32, 2
    $region13: #{tpu_custom_call.1} parent=1 // pred_fallthru
      _
    // Predicated region
    $region14: #{tpu_custom_call.1} parent=1 // pred_check
      _
    $region15: #{tpu_custom_call.1} parent=1 // pred_check_branch
      %151 = sbr.rel (0) target = $region17
    $region16: #{tpu_custom_call.1} parent=1 // pred_region
      %152 = dma.done [#allocation6], 256
    $region17: #{tpu_custom_call.1} parent=1 // pred_fallthru
      _
    %153 = vsyncpa [#allocation5], 1
    %154 = vsyncpa [#allocation6], 1

</llo_original>
